<compile_context>
chip_gen: v7x
topology: tpu7x:2x2x1
jax: 0.10.0
libtpu: 0.0.40
codegen_flags: <defaults>
</compile_context>

<pallas_src>
import functools

import jax
import jax.numpy as jnp
import numpy as np
from jax import lax
from jax.experimental import pallas as pl
from jax.experimental.pallas import tpu as pltpu

H = W = 16                      # high-res spatial size
HW = H * W                      # 256 -> two full 128-lane tiles (lane dense)
HW4 = (H // 2) * (W // 2)       # low-res pixel count
CIN = 2                         # concat(t1_hr, upsampled t2_lr)
HID = 8                         # hidden channels of conv1
COUT = 1                        # output channels (t2_sp)
KS = 3                          # conv kernel size
TAPS = [(dh, dw) for dh in (-1, 0, 1) for dw in (-1, 0, 1)]


@functools.lru_cache(maxsize=None)
def _roll_sign():
    """Probe pltpu.roll's rotation convention once (tiny one-off kernel).

    Returns the sign s such that pltpu.roll(x, (s*d) % n, axis=-1)[p] == x[p+d].
    """
    def probe(x_ref, o_ref):
        o_ref[...] = pltpu.roll(x_ref[...], 1, axis=1)

    x = jnp.tile(jnp.arange(128, dtype=jnp.float32)[None, :], (8, 1))
    out = pl.pallas_call(
        probe, out_shape=jax.ShapeDtypeStruct((8, 128), jnp.float32))(x)
    # jnp.roll-like convention: out[0,0] == 127 -> shift = -d ; else shift = +d
    return -1 if float(out[0, 0]) > 64.0 else 1


def _fused_wrapper_kernel(roll_sign, t1_ref, lr_ref, t2hr_ref,
                          w1_ref, b1_ref, w2_ref, b2_ref,
                          out_ref, loss_ref):
    """Single-step fused forward for the whole batch.

    t1_ref   : VMEM (B, HW)            t1_hr, flattened per image
    lr_ref   : VMEM (B, HW4)           t2_lr, flattened per image
    t2hr_ref : VMEM (B, HW)            target, flattened
    w1_ref   : SMEM (KS*KS*CIN*HID,)   conv1 weights, HWIO flattened
    b1_ref   : SMEM (HID,)
    w2_ref   : SMEM (KS*KS*HID,)       conv2 weights (COUT=1), HWIO flattened
    b2_ref   : SMEM (COUT,)
    out_ref  : VMEM (B, HW)            t2_sp prediction (lane-dense store)
    loss_ref : SMEM (1, 1)             MSE loss
    """
    B = t1_ref.shape[0]
    f32 = jnp.float32

    # ---- fused glue: nearest x2 upsample via a 0/1 replication matmul ------
    q = lax.broadcasted_iota(jnp.int32, (HW4, HW), 0)       # low-res index
    p = lax.broadcasted_iota(jnp.int32, (HW4, HW), 1)       # high-res index
    src = (p // (2 * W)) * (W // 2) + (p % W) // 2          # nearest source
    up_mat = (q == src).astype(f32)                         # (HW4, HW)
    x_t2 = jnp.dot(lr_ref[...], up_mat, preferred_element_type=f32)  # (B, HW)
    x_t1 = t1_ref[...].astype(f32)
    x = (x_t1, x_t2)                                        # "concat": 2 slabs

    # ---- 3x3 SAME-conv taps: lane roll + boundary masks (hoisted once) -----
    lane = lax.broadcasted_iota(jnp.int32, (B, HW), 1)
    row, col = lane // W, lane % W
    masks = {}
    for dh, dw in TAPS:
        masks[(dh, dw)] = ((row + dh >= 0) & (row + dh < H) &
                           (col + dw >= 0) & (col + dw < W))

    def tap(v, dh, dw):
        # returns slab s with s[b, p] = v[b, p + dh*W + dw], zero outside image
        d = dh * W + dw
        if d == 0:
            return v
        v = pltpu.roll(v, (roll_sign * d) % HW, axis=1)
        return jnp.where(masks[(dh, dw)], v, 0.0)

    # ---- conv1 (3x3, pad=1) + bias + ReLU: taps outer, channels unrolled ---
    acc1 = [None] * HID
    for dh, dw in TAPS:
        base = ((dh + 1) * KS + (dw + 1)) * CIN * HID
        for c in range(CIN):
            s = tap(x[c], dh, dw)
            for o in range(HID):
                t = w1_ref[base + c * HID + o] * s
                acc1[o] = t if acc1[o] is None else acc1[o] + t
    hid = [jnp.maximum(acc1[o] + b1_ref[o], 0.0) for o in range(HID)]

    # ---- conv2 (3x3, pad=1) + bias: combine channels first, then one roll --
    acc2 = None
    for dh, dw in TAPS:
        base = ((dh + 1) * KS + (dw + 1)) * HID
        g = None
        for c in range(HID):
            t = w2_ref[base + c] * hid[c]
            g = t if g is None else g + t
        g = tap(g, dh, dw)              # roll/mask commutes with the combine
        acc2 = g if acc2 is None else acc2 + g
    y = acc2 + b2_ref[0]                # (B, HW) prediction, f32

    # ---- outputs: lane-dense prediction store + in-kernel MSE --------------
    out_ref[...] = y.astype(out_ref.dtype)
    diff = y - t2hr_ref[...].astype(f32)
    loss_ref[0, 0] = jnp.sum(diff * diff) * (1.0 / (B * COUT * H * W))


def model_and_loss(t1_hr, t2_lr, t2_hr, params):
    """Runs the fused Pallas kernel. Inputs/outputs are NCHW float32."""
    w1, b1, w2, b2 = params
    B = t1_hr.shape[0]

    # Free contiguous reshapes into the lane-dense flat layout. No repeat /
    # concat / pad materialization -- that glue is fused into the kernel.
    t1_flat = t1_hr.reshape(B, HW)
    lr_flat = t2_lr.reshape(B, HW4)
    t2hr_flat = t2_hr.reshape(B, HW)
    w1_flat = w1.reshape(-1)            # (KS,KS,CIN,HID)  -> (144,)
    w2_flat = w2.reshape(-1)            # (KS,KS,HID,COUT) -> (72,)

    smem = pl.BlockSpec(memory_space=pltpu.MemorySpace.SMEM)

    grid_spec = pltpu.PrefetchScalarGridSpec(
        num_scalar_prefetch=0,
        grid=(1,),                       # whole batch in a single step
        in_specs=[
            pl.BlockSpec((B, HW), lambda i: (0, 0)),     # t1_hr flat
            pl.BlockSpec((B, HW4), lambda i: (0, 0)),    # t2_lr flat
            pl.BlockSpec((B, HW), lambda i: (0, 0)),     # t2_hr flat
            smem,                                         # w1
            smem,                                         # b1
            smem,                                         # w2
            smem,                                         # b2
        ],
        out_specs=(
            pl.BlockSpec((B, HW), lambda i: (0, 0)),     # t2_sp flat
            smem,                                         # loss scalar
        ),
    )

    kernel = functools.partial(_fused_wrapper_kernel, _roll_sign())

    t2_sp_flat, loss2d = pl.pallas_call(
        kernel,
        out_shape=(
            jax.ShapeDtypeStruct((B, HW), jnp.float32),
            jax.ShapeDtypeStruct((1, 1), jnp.float32),
        ),
        grid_spec=grid_spec,
        compiler_params=pltpu.CompilerParams(
            dimension_semantics=("arbitrary",)),
    )(t1_flat, lr_flat, t2hr_flat, w1_flat, b1, w2_flat, b2)

    t2_sp = t2_sp_flat.reshape(B, COUT, H, W)
    return t2_sp, loss2d[0, 0]


def base_model_wrapper_forward(batch_data, params, return_preds=False):
    """Exact semantics of BaseModelWrapper.forward."""
    t1_hr = batch_data['t1_hr']
    t2_hr = batch_data['t2_hr']
    t2_lr = batch_data['t2_lr']
    t2_sp, loss = model_and_loss(t1_hr, t2_lr, t2_hr, params)
    if return_preds:
        return (t2_sp, t2_hr)
    return loss


def init_params(key):
    k1, k2, k3, k4 = jax.random.split(key, 4)
    w1 = jax.random.normal(k1, (KS, KS, CIN, HID), jnp.float32) / np.sqrt(KS * KS * CIN)
    b1 = jax.random.normal(k2, (HID,), jnp.float32) * 0.01
    w2 = jax.random.normal(k3, (KS, KS, HID, COUT), jnp.float32) / np.sqrt(KS * KS * HID)
    b2 = jax.random.normal(k4, (COUT,), jnp.float32) * 0.01
    return (w1, b1, w2, b2)


def _reference_forward(batch_data, params):
    """Pure-JAX reference (lax.conv) for a correctness check."""
    w1, b1, w2, b2 = params
    t1_hr, t2_hr, t2_lr = batch_data['t1_hr'], batch_data['t2_hr'], batch_data['t2_lr']
    t2_up = jnp.repeat(jnp.repeat(t2_lr, 2, axis=2), 2, axis=3)
    x = jnp.concatenate([t1_hr, t2_up], axis=1)
    dn = ('NCHW', 'HWIO', 'NCHW')
    h = jax.lax.conv_general_dilated(x, w1, (1, 1), 'SAME', dimension_numbers=dn)
    h = jnp.maximum(h + b1.reshape(1, HID, 1, 1), 0.0)
    y = jax.lax.conv_general_dilated(h, w2, (1, 1), 'SAME', dimension_numbers=dn)
    y = y + b2.reshape(1, COUT, 1, 1)
    loss = jnp.mean((y - t2_hr) ** 2)
    return y, loss


if __name__ == "__main__":
    key = jax.random.PRNGKey(0)
    kp, k1, k2, k3 = jax.random.split(key, 4)
    params = init_params(kp)

    B = 2
    batch_data = {
        't1_hr': jax.random.normal(k1, (B, 1, H, W), jnp.float32),
        't2_hr': jax.random.normal(k2, (B, 1, H, W), jnp.float32),
        't2_lr': jax.random.normal(k3, (B, 1, H // 2, W // 2), jnp.float32),
    }

    # forward (loss path) and forward (return_preds path)
    loss = base_model_wrapper_forward(batch_data, params)
    t2_sp, t2_hr = base_model_wrapper_forward(batch_data, params, return_preds=True)
    jax.block_until_ready((loss, t2_sp, t2_hr))

    # correctness vs pure-JAX reference
    y_ref, loss_ref = _reference_forward(batch_data, params)
    np.testing.assert_allclose(np.asarray(t2_sp), np.asarray(y_ref), rtol=1e-4, atol=1e-4)
    np.testing.assert_allclose(float(loss), float(loss_ref), rtol=1e-4, atol=1e-5)

    print("KERNEL_OK")
</pallas_src>

<mosaic_0001>
module attributes {stable_mosaic.version = 11 : i64} {
  func.func @probe(%arg0: memref<8x128xf32, #tpu.memory_space<vmem>>, %arg1: memref<8x128xf32, #tpu.memory_space<vmem>>) attributes {dimension_semantics = [], scalar_prefetch = 0 : i64, scratch_operands = 0 : i64, tpu.core_type = #tpu.core_type<tc>} {
    %c0 = arith.constant 0 : index
    %c0_0 = arith.constant 0 : index
    %0 = vector.load %arg0[%c0, %c0_0] : memref<8x128xf32, #tpu.memory_space<vmem>>, vector<8x128xf32>
    %c1_i32 = arith.constant 1 : i32
    %1 = tpu.dynamic_rotate %0 by %c1_i32 dim 1 : vector<8x128xf32>, i32 -> vector<8x128xf32>
    %c0_1 = arith.constant 0 : index
    %c0_2 = arith.constant 0 : index
    %2 = vector.load %arg1[%c0_1, %c0_2] : memref<8x128xf32, #tpu.memory_space<vmem>>, vector<8x128xf32>
    tpu.vector_store %arg1[%c0_1, %c0_2], %1 {strides = array<i32>} : memref<8x128xf32, #tpu.memory_space<vmem>>, vector<8x128xf32>,
    return
  }
}

</mosaic_0001>

<llo_original>
// kernel: tpu_custom_call.1
$region0: #{tpu_custom_call.1}
  #allocation0 [shape = 'u32[]', space=smem, size = 0x4, offset = 0x4, fixed_abs, tag = 'smem constant byte address 0x4 - core index']
  #allocation1 [shape = 'u32[144,128]{1,0:T(1,128)}', space=vmem, size = 0x12000, scoped, tag = 'internal scratch']
  %s0 = inlined_call_operand.hbm [shape: f32[8,128], index: 0, kind: input, shape index: {}]
  %s1 = inlined_call_operand.hbm [shape: f32[8,128], index: 1, kind: output, shape index: {}]
  %s2 = sld [smem:[#allocation0]]
  $region18: #{tpu_custom_call.1} parent=0
    _
  %s4 = ssub.s32 1, %s2
  %s5 = scalar_select 0, %s4, %s2
  $region1: #{tpu_custom_call.1} parent=0
    #allocation2 [shape = 'u8[4096]{0}', space=vmem, size = 0x1000, scoped, tag = 'input window, operand 0, single buffered']
    #allocation3 [shape = 's32[1]{0}', space=sflag, size = 0x4, scoped, tag = 'scoped memory for tpu_custom_call.1']
    #allocation4 [shape = 's32[1]{0}', space=sflag, size = 0x4, scoped, tag = 'scoped memory for tpu_custom_call.1']
    #allocation5 [shape = 'u8[4096]{0}', space=vmem, size = 0x1000, scoped, tag = 'output window, operand 0, single buffered']
    %6 = vsyncpa [#allocation3], 0
    %7 = vsyncpa [#allocation4], 0
    // Predicated region
    $region2: #{tpu_custom_call.1} parent=1 // pred_check
      _
    $region3: #{tpu_custom_call.1} parent=1 // pred_check_branch
      %9 = sbr.rel (0) target = $region5
    $region4: #{tpu_custom_call.1} parent=1 // pred_region
      %s11 = ssub.s32 128, 128
      %12 = vsyncadd [#allocation3], %s11
      %s14 = sshll.u32 [#allocation2], 4
      %s15 = int_to_ptr.vmem [resolvable:$true] %s14
      %17 = dma.hbm_to_vmem [thread:$0]  %s0, 128, %s15, [#allocation3]
    $region5: #{tpu_custom_call.1} parent=1 // pred_fallthru
      _
    // Predicated region
    $region6: #{tpu_custom_call.1} parent=1 // pred_check
      _
    $region7: #{tpu_custom_call.1} parent=1 // pred_check_branch
      %19 = sbr.rel (0) target = $region9
    $region8: #{tpu_custom_call.1} parent=1 // pred_region
      %20 = dma.done [#allocation3], 128
    $region9: #{tpu_custom_call.1} parent=1 // pred_fallthru
      _
    %v21 = vld [vmem:[#allocation2] sm:$0xff]
    %22 = vrot.lane.b32.xlu0 %v21, 1
    %v23 = vpop.permute.xlu0 %22
    %24 = vst [vmem:[#allocation5] sm:$0xff] %v23
    // Predicated region
    $region10: #{tpu_custom_call.1} parent=1 // pred_check
      _
    $region11: #{tpu_custom_call.1} parent=1 // pred_check_branch
      %26 = sbr.rel (0) target = $region13
    $region12: #{tpu_custom_call.1} parent=1 // pred_region
      %s28 = ssub.s32 128, 128
      %29 = vsyncadd [#allocation4], %s28
      %s31 = sshll.u32 [#allocation5], 4
      %s32 = int_to_ptr.vmem [resolvable:$true] %s31
      %34 = dma.vmem_to_hbm [thread:$0]  %s32, 128, %s1, [#allocation4]
    $region13: #{tpu_custom_call.1} parent=1 // pred_fallthru
      _
    // Predicated region
    $region14: #{tpu_custom_call.1} parent=1 // pred_check
      _
    $region15: #{tpu_custom_call.1} parent=1 // pred_check_branch
      %36 = sbr.rel (0) target = $region17
    $region16: #{tpu_custom_call.1} parent=1 // pred_region
      %37 = dma.done [#allocation4], 128
    $region17: #{tpu_custom_call.1} parent=1 // pred_fallthru
      _
    %38 = vsyncpa [#allocation3], 1
    %39 = vsyncpa [#allocation4], 1

</llo_original>
